<compile_context>
chip_gen: v7x
topology: tpu7x:2x2x1
jax: 0.10.0
libtpu: 0.0.40
codegen_flags: <defaults>
</compile_context>

<pallas_src>
import math

import jax
import jax.numpy as jnp
from jax import lax
from jax.experimental import pallas as pl
from jax.experimental.pallas import tpu as pltpu


def _round_up(x, m):
    return ((x + m - 1) // m) * m


def _gelu_exact(x):
    # PyTorch nn.GELU() default = exact erf formulation (computed in f32).
    return 0.5 * x * (1.0 + lax.erf(x * (1.0 / math.sqrt(2.0))))


def _vmem_budget_bytes():
    """Generation-aware VMEM budget: ~75% of per-core capacity, >=8 MiB headroom."""
    cap = 64 * 1024 * 1024  # conservative default (v7x per-TC VMEM)
    try:
        cap = int(pltpu.get_tpu_info().vmem_capacity_bytes)
    except Exception:
        pass  # hardware query unavailable -> keep conservative default
    return min(cap * 3 // 4, cap - (8 << 20))


def _pick_hc(H, target=512):
    """Hidden-dim chunk: <= target, multiple of 128, dividing H (else H itself)."""
    if H <= target:
        return H
    for c in range(target, 127, -128):
        if H % c == 0:
            return c
    return H


def _vmem_estimate(tm, D_in, H, Hc, D_out, x_bytes, w_bytes, out_bytes):
    weights = (D_in * H + H * D_out) * w_bytes       # resident, single-buffered
    biases = (H + D_out) * 4
    x_tiles = 2 * tm * D_in * x_bytes                # double-buffered input tiles
    o_tiles = 2 * tm * D_out * out_bytes             # double-buffered output tiles
    interm = tm * D_in * w_bytes                     # compute-dtype copy of x tile
    interm += tm * Hc * (4 + w_bytes)                # f32 hidden chunk + bf16 cast
    interm += tm * D_out * 4                         # f32 accumulator
    return weights + biases + x_tiles + o_tiles + interm


def _pick_tm(M, D_in, H, Hc, D_out, x_bytes, w_bytes, out_bytes, budget, tm_target):
    tm = max(128, _round_up(tm_target, 128))
    # Fit the estimated footprint into the per-generation VMEM budget.
    while tm > 128 and _vmem_estimate(tm, D_in, H, Hc, D_out,
                                      x_bytes, w_bytes, out_bytes) > budget:
        tm -= 128
    # Keep >=4 grid steps when possible (both v7x TCs + input/output pipelining).
    while tm > 128 and pl.cdiv(M, tm) < 4:
        tm = max(128, _round_up(tm // 2, 128))
    if M <= tm:
        tm = M  # single full-extent block (always layout-legal, no partial block)
    return tm


def _make_mlp_kernel(Hc, n_chunks, compute_dtype):
    def mlp_kernel(x_ref, w1_ref, b1_ref, w2_ref, b2_ref, o_ref):
        # x_ref : (tm, D_in)   row tile, native dtype (cast to bf16 in VMEM)
        # w1_ref: (D_in, H)    fc1 weight (transposed vs torch), compute dtype
        # b1_ref: (1, H)       fc1 bias, f32
        # w2_ref: (H, D_out)   fc2 weight, compute dtype
        # b2_ref: (1, D_out)   fc2 bias, f32
        # o_ref : (tm, D_out)  output tile
        x = x_ref[...].astype(compute_dtype)
        tm = x_ref.shape[0]
        d_out = o_ref.shape[1]

        if n_chunks == 1:
            h = jnp.dot(x, w1_ref[...], preferred_element_type=jnp.float32)
            h = _gelu_exact(h + b1_ref[...])
            acc = jnp.dot(h.astype(compute_dtype), w2_ref[...],
                          preferred_element_type=jnp.float32)
        else:
            def body(j, acc):
                off = pl.multiple_of(j * Hc, Hc)
                h = jnp.dot(x, w1_ref[:, pl.ds(off, Hc)],
                            preferred_element_type=jnp.float32)
                h = _gelu_exact(h + b1_ref[:, pl.ds(off, Hc)])
                return acc + jnp.dot(h.astype(compute_dtype),
                                     w2_ref[pl.ds(off, Hc), :],
                                     preferred_element_type=jnp.float32)

            acc = lax.fori_loop(0, n_chunks, body,
                                jnp.zeros((tm, d_out), jnp.float32),
                                unroll=True)

        # Dropout(p=0.0) is the identity -> nothing to do.
        o_ref[...] = (acc + b2_ref[...]).astype(o_ref.dtype)

    return mlp_kernel


def _const_spec(shape):
    idx = lambda i: (0,) * len(shape)
    if hasattr(pl, "Buffered"):
        # Resident block: constant index_map, so double-buffering buys nothing.
        return pl.BlockSpec(shape, idx, pipeline_mode=pl.Buffered(1))
    return pl.BlockSpec(shape, idx)


def _build_mlp_call(M, D_in, H, Hc, D_out, tm, x_dtype, compute_dtype, out_dtype,
                    vmem_limit_bytes):
    kernel = _make_mlp_kernel(Hc, H // Hc, compute_dtype)
    grid = (pl.cdiv(M, tm),)

    x_bytes = jnp.dtype(x_dtype).itemsize
    w_bytes = jnp.dtype(compute_dtype).itemsize
    out_bytes = jnp.dtype(out_dtype).itemsize
    cost = pl.CostEstimate(
        flops=2 * M * (D_in * H + H * D_out),
        transcendentals=M * H,  # erf inside the GELU
        bytes_accessed=(M * D_in * x_bytes
                        + (D_in * H + H * D_out) * w_bytes
                        + (H + D_out) * 4
                        + M * D_out * out_bytes),
    )

    return pl.pallas_call(
        kernel,
        out_shape=jax.ShapeDtypeStruct((M, D_out), out_dtype),
        grid_spec=pltpu.PrefetchScalarGridSpec(
            num_scalar_prefetch=0,
            grid=grid,
            in_specs=[
                pl.BlockSpec((tm, D_in), lambda i: (i, 0)),   # x row tile (pipelined)
                _const_spec((D_in, H)),                        # fc1 weight (resident)
                _const_spec((1, H)),                           # fc1 bias
                _const_spec((H, D_out)),                       # fc2 weight (resident)
                _const_spec((1, D_out)),                       # fc2 bias
            ],
            out_specs=pl.BlockSpec((tm, D_out), lambda i: (i, 0)),
        ),
        compiler_params=pltpu.CompilerParams(
            dimension_semantics=("parallel",),   # row axis shards across TCs (v7x)
            vmem_limit_bytes=vmem_limit_bytes,
        ),
        cost_estimate=cost,
    )


def mlp_pallas(x, w1, b1, w2, b2, *, tm=512, hc=512,
               compute_dtype=jnp.bfloat16, out_dtype=None):
    """x: (B, N, D_in). w1: (D_in, H), w2: (H, D_out) (already transposed vs torch).

    Returns (B, N, D_out) in `out_dtype` (defaults to x.dtype). Matmuls run in
    `compute_dtype` on the MXU with f32 accumulation; bias adds / GELU are in f32.
    """
    B, N, D_in = x.shape
    H = w1.shape[1]
    D_out = w2.shape[1]
    M = B * N
    out_dtype = out_dtype or x.dtype

    budget = _vmem_budget_bytes()
    Hc = _pick_hc(H, hc)
    x_bytes = jnp.dtype(x.dtype).itemsize
    w_bytes = jnp.dtype(compute_dtype).itemsize
    out_bytes = jnp.dtype(out_dtype).itemsize
    tm_eff = _pick_tm(M, D_in, H, Hc, D_out, x_bytes, w_bytes, out_bytes,
                      budget, tm)
    # TODO(synk): when resident bf16 weights alone exceed the VMEM budget
    # (very large D/H on v7x), switch to a 2-D grid that streams W1/W2 H-slices
    # via BlockSpec with a pl.when-initialized f32 accumulator scratch.

    # No wrapper-side cast/pad passes over x: the row tile is loaded in its
    # native dtype and cast inside the kernel; the ragged tail is a masked
    # partial block (grid = cdiv(M, tm)).
    x2d = x.reshape(M, D_in)
    w1c = w1.astype(compute_dtype)
    w2c = w2.astype(compute_dtype)
    b1_2d = b1.reshape(1, H).astype(jnp.float32)
    b2_2d = b2.reshape(1, D_out).astype(jnp.float32)

    call = _build_mlp_call(M, D_in, H, Hc, D_out, tm_eff,
                           x.dtype, compute_dtype, out_dtype, budget)
    out2d = call(x2d, w1c, b1_2d, w2c, b2_2d)
    return out2d.reshape(B, N, D_out)


def init_mlp_params(key, in_features, hidden_features, out_features):
    """Deterministic init mimicking nn.Linear's uniform(-1/sqrt(fan_in), 1/sqrt(fan_in)).
    Weights returned already transposed to (in, out)."""
    k1, k2, k3, k4 = jax.random.split(key, 4)
    bound1 = 1.0 / math.sqrt(in_features)
    bound2 = 1.0 / math.sqrt(hidden_features)
    w1 = jax.random.uniform(k1, (in_features, hidden_features), jnp.float32,
                            -bound1, bound1)
    b1 = jax.random.uniform(k2, (hidden_features,), jnp.float32, -bound1, bound1)
    w2 = jax.random.uniform(k3, (hidden_features, out_features), jnp.float32,
                            -bound2, bound2)
    b2 = jax.random.uniform(k4, (out_features,), jnp.float32, -bound2, bound2)
    return w1, b1, w2, b2


def mlp_reference(x, w1, b1, w2, b2, compute_dtype=jnp.float32):
    """Pure-JAX reference; `compute_dtype` mirrors the kernel's matmul precision."""
    cd = compute_dtype
    h = jnp.dot(x.astype(cd), w1.astype(cd), preferred_element_type=jnp.float32)
    h = h + b1.astype(jnp.float32)
    h = _gelu_exact(h)
    y = jnp.dot(h.astype(cd), w2.astype(cd), preferred_element_type=jnp.float32)
    y = y + b2.astype(jnp.float32)
    return y.astype(x.dtype)


if __name__ == "__main__":
    key = jax.random.PRNGKey(0)
    kx1, kp1, kx2, kp2, kx3, kp3 = jax.random.split(key, 6)

    # Test 1: small, lane-aligned ViT-style shapes (single grid step, single H chunk).
    B, N = 2, 64
    D_in, H, D_out = 128, 256, 128
    x = jax.random.normal(kx1, (B, N, D_in), jnp.float32)
    w1, b1, w2, b2 = init_mlp_params(kp1, D_in, H, D_out)
    out = jax.block_until_ready(mlp_pallas(x, w1, b1, w2, b2))
    ref_mirror = mlp_reference(x, w1, b1, w2, b2, compute_dtype=jnp.bfloat16)
    ref_f32 = mlp_reference(x, w1, b1, w2, b2, compute_dtype=jnp.float32)
    assert out.shape == (B, N, D_out)
    assert jnp.allclose(out, ref_mirror, atol=2e-2, rtol=2e-2), "mismatch vs bf16 reference"
    assert jnp.allclose(out, ref_f32, atol=8e-2, rtol=8e-2), "mismatch vs f32 reference"

    # Test 2: tiny ragged row count (M = 14) + narrow lanes (full-extent block).
    B2, N2 = 2, 7
    D_in2, H2, D_out2 = 32, 64, 32
    x2 = jax.random.normal(kx2, (B2, N2, D_in2), jnp.float32)
    p2 = init_mlp_params(kp2, D_in2, H2, D_out2)
    out2 = jax.block_until_ready(mlp_pallas(x2, *p2))
    ref2 = mlp_reference(x2, *p2, compute_dtype=jnp.bfloat16)
    assert out2.shape == (B2, N2, D_out2)
    assert jnp.allclose(out2, ref2, atol=2e-2, rtol=2e-2), "mismatch (ragged M)"

    # Test 3: multi-step grid with a partial last row block (M = 200, tm = 128)
    # and a chunked hidden dimension (H = 1024 -> 2 chunks of 512).
    B3, N3 = 2, 100
    D_in3, H3, D_out3 = 128, 1024, 128
    x3 = jax.random.normal(kx3, (B3, N3, D_in3), jnp.float32)
    p3 = init_mlp_params(kp3, D_in3, H3, D_out3)
    out3 = jax.block_until_ready(mlp_pallas(x3, *p3))
    ref3 = mlp_reference(x3, *p3, compute_dtype=jnp.bfloat16)
    assert out3.shape == (B3, N3, D_out3)
    assert jnp.allclose(out3, ref3, atol=2e-2, rtol=2e-2), "mismatch (partial block / H chunks)"

    print("KERNEL_OK")
</pallas_src>

<mosaic_0001>
module attributes {stable_mosaic.version = 11 : i64} {
  func.func @mlp_kernel(%arg0: i32, %arg1: memref<128x128xf32, #tpu.memory_space<vmem>>, %arg2: memref<128x256xbf16, #tpu.memory_space<vmem>>, %arg3: memref<1x256xf32, #tpu.memory_space<vmem>>, %arg4: memref<256x128xbf16, #tpu.memory_space<vmem>>, %arg5: memref<1x128xf32, #tpu.memory_space<vmem>>, %arg6: memref<128x128xf32, #tpu.memory_space<vmem>>) attributes {dimension_semantics = [#tpu.dimension_semantics<parallel>], iteration_bounds = array<i64: 1>, scalar_prefetch = 0 : i64, scratch_operands = 0 : i64, tpu.core_type = #tpu.core_type<tc>, window_params = [{transform_indices = @transform_0, window_bounds = array<i64: 128, 128>}, {pipeline_mode = #tpu.pipeline_mode<synchronous>, transform_indices = @transform_1, window_bounds = array<i64: 128, 256>}, {pipeline_mode = #tpu.pipeline_mode<synchronous>, transform_indices = @transform_2, window_bounds = array<i64: 1, 256>}, {pipeline_mode = #tpu.pipeline_mode<synchronous>, transform_indices = @transform_3, window_bounds = array<i64: 256, 128>}, {pipeline_mode = #tpu.pipeline_mode<synchronous>, transform_indices = @transform_4, window_bounds = array<i64: 1, 128>}, {transform_indices = @transform_5, window_bounds = array<i64: 128, 128>}]} {
    %c0 = arith.constant 0 : index
    %c0_0 = arith.constant 0 : index
    %0 = vector.load %arg1[%c0, %c0_0] : memref<128x128xf32, #tpu.memory_space<vmem>>, vector<128x128xf32>
    %1 = arith.truncf %0 : vector<128x128xf32> to vector<128x128xbf16>
    %c0_1 = arith.constant 0 : index
    %c0_2 = arith.constant 0 : index
    %2 = vector.load %arg2[%c0_1, %c0_2] : memref<128x256xbf16, #tpu.memory_space<vmem>>, vector<128x256xbf16>
    %cst = arith.constant dense<0.000000e+00> : vector<128x256xf32>
    %3 = tpu.matmul %1, %2, %cst {dimension_numbers = #tpu.dot_dimension_numbers<[1], [0], [0], [1], [0, 0, 1, 1], [], []>} : vector<128x128xbf16>, vector<128x256xbf16>, vector<128x256xf32> -> vector<128x256xf32>
    %c0_3 = arith.constant 0 : index
    %c0_4 = arith.constant 0 : index
    %4 = vector.load %arg3[%c0_3, %c0_4] : memref<1x256xf32, #tpu.memory_space<vmem>>, vector<1x256xf32>
    %5 = vector.broadcast %4 : vector<1x256xf32> to vector<128x256xf32>
    %6 = arith.addf %3, %5 : vector<128x256xf32>
    %cst_5 = arith.constant 5.000000e-01 : f32
    %7 = vector.broadcast %cst_5 : f32 to vector<128x256xf32>
    %8 = arith.mulf %7, %6 : vector<128x256xf32>
    %cst_6 = arith.constant 0.707106769 : f32
    %9 = vector.broadcast %cst_6 : f32 to vector<128x256xf32>
    %10 = arith.mulf %6, %9 : vector<128x256xf32>
    %11 = math.erf %10 : vector<128x256xf32>
    %cst_7 = arith.constant 1.000000e+00 : f32
    %12 = vector.broadcast %cst_7 : f32 to vector<128x256xf32>
    %13 = arith.addf %12, %11 : vector<128x256xf32>
    %14 = arith.mulf %8, %13 : vector<128x256xf32>
    %15 = arith.truncf %14 : vector<128x256xf32> to vector<128x256xbf16>
    %c0_8 = arith.constant 0 : index
    %c0_9 = arith.constant 0 : index
    %16 = vector.load %arg4[%c0_8, %c0_9] : memref<256x128xbf16, #tpu.memory_space<vmem>>, vector<256x128xbf16>
    %cst_10 = arith.constant dense<0.000000e+00> : vector<128x128xf32>
    %17 = tpu.matmul %15, %16, %cst_10 {dimension_numbers = #tpu.dot_dimension_numbers<[1], [0], [0], [1], [0, 0, 1, 1], [], []>} : vector<128x256xbf16>, vector<256x128xbf16>, vector<128x128xf32> -> vector<128x128xf32>
    %c0_11 = arith.constant 0 : index
    %c0_12 = arith.constant 0 : index
    %18 = vector.load %arg5[%c0_11, %c0_12] : memref<1x128xf32, #tpu.memory_space<vmem>>, vector<1x128xf32>
    %19 = vector.broadcast %18 : vector<1x128xf32> to vector<128x128xf32>
    %20 = arith.addf %17, %19 : vector<128x128xf32>
    %c0_13 = arith.constant 0 : index
    %c0_14 = arith.constant 0 : index
    %21 = vector.load %arg6[%c0_13, %c0_14] : memref<128x128xf32, #tpu.memory_space<vmem>>, vector<128x128xf32>
    tpu.vector_store %arg6[%c0_13, %c0_14], %20 {strides = array<i32>} : memref<128x128xf32, #tpu.memory_space<vmem>>, vector<128x128xf32>,
    return
  }
  func.func @transform_0(%arg0: i32) -> (i32, i32) {
    %c0_i32 = arith.constant 0 : i32
    %c0_i32_0 = arith.constant 0 : i32
    return %arg0, %c0_i32 : i32, i32
  }
  func.func @transform_1(%arg0: i32) -> (i32, i32) {
    %c0_i32 = arith.constant 0 : i32
    %c0_i32_0 = arith.constant 0 : i32
    %c0_i32_1 = arith.constant 0 : i32
    return %c0_i32, %c0_i32_0 : i32, i32
  }
  func.func @transform_2(%arg0: i32) -> (i32, i32) {
    %c0_i32 = arith.constant 0 : i32
    %c0_i32_0 = arith.constant 0 : i32
    %c0_i32_1 = arith.constant 0 : i32
    return %c0_i32, %c0_i32_0 : i32, i32
  }
  func.func @transform_3(%arg0: i32) -> (i32, i32) {
    %c0_i32 = arith.constant 0 : i32
    %c0_i32_0 = arith.constant 0 : i32
    %c0_i32_1 = arith.constant 0 : i32
    return %c0_i32, %c0_i32_0 : i32, i32
  }
  func.func @transform_4(%arg0: i32) -> (i32, i32) {
    %c0_i32 = arith.constant 0 : i32
    %c0_i32_0 = arith.constant 0 : i32
    %c0_i32_1 = arith.constant 0 : i32
    return %c0_i32, %c0_i32_0 : i32, i32
  }
  func.func @transform_5(%arg0: i32) -> (i32, i32) {
    %c0_i32 = arith.constant 0 : i32
    %c0_i32_0 = arith.constant 0 : i32
    return %arg0, %c0_i32 : i32, i32
  }
}

</mosaic_0001>

<llo_original>
// kernel: tpu_custom_call.1
$region0: #{tpu_custom_call.1}
  #allocation0 [shape = 'u32[]', space=smem, size = 0x4, offset = 0x4, fixed_abs, tag = 'smem constant byte address 0x4 - core index']
  #allocation1 [shape = 'u32[144,128]{1,0:T(1,128)}', space=vmem, size = 0x12000, scoped, tag = 'internal scratch']
  %s0 = inlined_call_operand.hbm [shape: f32[128,128], index: 0, kind: input, shape index: {}]
  %s1 = inlined_call_operand.hbm [shape: bf16[128,256], index: 1, kind: input, shape index: {}]
  %s2 = inlined_call_operand.vmem [shape: f32[1,256], index: 2, kind: input, shape index: {}]
  %s3 = inlined_call_operand.hbm [shape: bf16[256,128], index: 3, kind: input, shape index: {}]
  %s4 = inlined_call_operand.vmem [shape: f32[1,128], index: 4, kind: input, shape index: {}]
  %s5 = inlined_call_operand.hbm [shape: f32[128,128], index: 5, kind: output, shape index: {}]
  %s6 = sld [smem:[#allocation0]]
  $region42: #{tpu_custom_call.1} parent=0
    _
  %s8 = ssub.s32 1, %s6
  %s9 = scalar_select 0, %s8, %s6
  $region1: #{tpu_custom_call.1} parent=0
    #allocation2 [shape = 'u8[65536]{0}', space=vmem, size = 0x10000, scoped, tag = 'input window, operand 0, single buffered']
    #allocation3 [shape = 's32[1]{0}', space=sflag, size = 0x4, scoped, tag = 'scoped memory for tpu_custom_call.1']
    #allocation4 [shape = 's32[1]{0}', space=sflag, size = 0x4, scoped, tag = 'scoped memory for tpu_custom_call.1']
    #allocation5 [shape = 'u8[65536]{0}', space=vmem, size = 0x10000, scoped, tag = 'input window, operand 1, single buffered']
    #allocation6 [shape = 's32[1]{0}', space=sflag, size = 0x4, scoped, tag = 'scoped memory for tpu_custom_call.1']
    #allocation7 [shape = 'u8[65536]{0}', space=vmem, size = 0x10000, scoped, tag = 'input window, operand 3, single buffered']
    #allocation8 [shape = 'u8[65536]{0}', space=vmem, size = 0x10000, scoped, tag = 'output window, operand 0, single buffered']
    %10 = vsyncpa [#allocation3], 0
    %11 = vsyncpa [#allocation6], 0
    %12 = vsyncpa [#allocation4], 0
    // Predicated region
    $region2: #{tpu_custom_call.1} parent=1 // pred_check
      _
    $region3: #{tpu_custom_call.1} parent=1 // pred_check_branch
      %14 = sbr.rel (0) target = $region5
    $region4: #{tpu_custom_call.1} parent=1 // pred_region
      %s16 = ssub.s32 2048, 2048
      %17 = vsyncadd [#allocation3], %s16
      %s18 = sshll.u32 [#allocation2], 4
      %s19 = int_to_ptr.vmem [resolvable:$true] %s18
      %24 = dma.hbm_to_vmem [thread:$0]  %s0, 2048, %s19, [#allocation3], 128, 128, 8
    $region5: #{tpu_custom_call.1} parent=1 // pred_fallthru
      _
    // Predicated region
    $region6: #{tpu_custom_call.1} parent=1 // pred_check
      _
    $region7: #{tpu_custom_call.1} parent=1 // pred_check_branch
      %26 = sbr.rel (0) target = $region9
    $region8: #{tpu_custom_call.1} parent=1 // pred_region
      %s28 = ssub.s32 2048, 2048
      %29 = vsyncadd [#allocation6], %s28
      %s30 = sshll.u32 [#allocation5], 4
      %s31 = int_to_ptr.vmem [resolvable:$true] %s30
      %36 = dma.hbm_to_vmem [thread:$0]  %s1, 2048, %s31, [#allocation6], 128, 128, 8
    $region9: #{tpu_custom_call.1} parent=1 // pred_fallthru
      _
    // Predicated region
    $region10: #{tpu_custom_call.1} parent=1 // pred_check
      _
    $region11: #{tpu_custom_call.1} parent=1 // pred_check_branch
      %38 = sbr.rel (0) target = $region13
    $region12: #{tpu_custom_call.1} parent=1 // pred_region
      _
    $region13: #{tpu_custom_call.1} parent=1 // pred_fallthru
      _
    // Predicated region
    $region14: #{tpu_custom_call.1} parent=1 // pred_check
      _
    $region15: #{tpu_custom_call.1} parent=1 // pred_check_branch
      %40 = sbr.rel (0) target = $region17
    $region16: #{tpu_custom_call.1} parent=1 // pred_region
      %s42 = ssub.s32 2048, 2048
      %43 = vsyncadd [#allocation6], %s42
      %s44 = sshll.u32 [#allocation7], 4
      %s45 = int_to_ptr.vmem [resolvable:$true] %s44
      %50 = dma.hbm_to_vmem [thread:$0]  %s3, 2048, %s45, [#allocation6], 64, 64, 4
    $region17: #{tpu_custom_call.1} parent=1 // pred_fallthru
      _
    // Predicated region
    $region18: #{tpu_custom_call.1} parent=1 // pred_check
      _
    $region19: #{tpu_custom_call.1} parent=1 // pred_check_branch
      %52 = sbr.rel (0) target = $region21
    $region20: #{tpu_custom_call.1} parent=1 // pred_region
      _
    $region21: #{tpu_custom_call.1} parent=1 // pred_fallthru
      _
    // Predicated region
    $region22: #{tpu_custom_call.1} parent=1 // pred_check
      _
    $region23: #{tpu_custom_call.1} parent=1 // pred_check_branch
      %54 = sbr.rel (0) target = $region25
    $region24: #{tpu_custom_call.1} parent=1 // pred_region
      %55 = dma.done [#allocation3], 2048
    $region25: #{tpu_custom_call.1} parent=1 // pred_fallthru
      _
    // Predicated region
    $region26: #{tpu_custom_call.1} parent=1 // pred_check
      _
    $region27: #{tpu_custom_call.1} parent=1 // pred_check_branch
      %57 = sbr.rel (0) target = $region29
    $region28: #{tpu_custom_call.1} parent=1 // pred_region
      %58 = dma.done [#allocation6], 2048
    $region29: #{tpu_custom_call.1} parent=1 // pred_fallthru
      _
    // Predicated region
    $region30: #{tpu_custom_call.1} parent=1 // pred_check
      _
    $region31: #{tpu_custom_call.1} parent=1 // pred_check_branch
      %60 = sbr.rel (0) target = $region33
    $region32: #{tpu_custom_call.1} parent=1 // pred_region
      %61 = dma.done [#allocation6], 2048
    $region33: #{tpu_custom_call.1} parent=1 // pred_fallthru
      _
    %v63 = vld [vmem:[#allocation2] sm:$0xff]
    %v64 = vld [vmem:[#allocation2 + $0x8] sm:$0xff]
    %v65 = vld [vmem:[#allocation2 + $0x10] sm:$0xff]
    %v66 = vld [vmem:[#allocation2 + $0x18] sm:$0xff]
    %v67 = vld [vmem:[#allocation2 + $0x20] sm:$0xff]
    %v68 = vld [vmem:[#allocation2 + $0x28] sm:$0xff]
    %v69 = vld [vmem:[#allocation2 + $0x30] sm:$0xff]
    %v70 = vld [vmem:[#allocation2 + $0x38] sm:$0xff]
    %v71 = vld [vmem:[#allocation2 + $0x40] sm:$0xff]
    %v72 = vld [vmem:[#allocation2 + $0x48] sm:$0xff]
    %v73 = vld [vmem:[#allocation2 + $0x50] sm:$0xff]
    %v74 = vld [vmem:[#allocation2 + $0x58] sm:$0xff]
    %v75 = vld [vmem:[#allocation2 + $0x60] sm:$0xff]
    %v76 = vld [vmem:[#allocation2 + $0x68] sm:$0xff]
    %v77 = vld [vmem:[#allocation2 + $0x70] sm:$0xff]
    %v78 = vld [vmem:[#allocation2 + $0x78] sm:$0xff]
    %v79 = vpack.c.bf16 %v64, %v63
    %v80 = vpack.c.bf16 %v66, %v65
    %v81 = vpack.c.bf16 %v68, %v67
    %v82 = vpack.c.bf16 %v70, %v69
    %v83 = vpack.c.bf16 %v72, %v71
    %v84 = vpack.c.bf16 %v74, %v73
    %v85 = vpack.c.bf16 %v76, %v75
    %v86 = vpack.c.bf16 %v78, %v77
    %v87 = vld [vmem:[#allocation5] sm:$0xff]
    %v88 = vld [vmem:[#allocation5 + $0x8] sm:$0xff]
    %v89 = vld [vmem:[#allocation5 + $0x10] sm:$0xff]
    %v90 = vld [vmem:[#allocation5 + $0x18] sm:$0xff]
    %v91 = vld [vmem:[#allocation5 + $0x20] sm:$0xff]
    %v92 = vld [vmem:[#allocation5 + $0x28] sm:$0xff]
    %v93 = vld [vmem:[#allocation5 + $0x30] sm:$0xff]
    %v94 = vld [vmem:[#allocation5 + $0x38] sm:$0xff]
    %v95 = vld [vmem:[#allocation5 + $0x40] sm:$0xff]
    %v96 = vld [vmem:[#allocation5 + $0x48] sm:$0xff]
    %v97 = vld [vmem:[#allocation5 + $0x50] sm:$0xff]
    %v98 = vld [vmem:[#allocation5 + $0x58] sm:$0xff]
    %v99 = vld [vmem:[#allocation5 + $0x60] sm:$0xff]
    %v100 = vld [vmem:[#allocation5 + $0x68] sm:$0xff]
    %v101 = vld [vmem:[#allocation5 + $0x70] sm:$0xff]
    %v102 = vld [vmem:[#allocation5 + $0x78] sm:$0xff]
    %v103 = vld [vmem:[%s2] sm:$0x3]
    %v105 = vlaneseq
    %v106 = vshrl.u32 %v105, 7
    %v107 = vsub.s32 0, %v106
    %v108 = vrot.slane %v103, %v107
    %v109 = vlaneseq
    %v110 = vshrl.u32 %v109, 7
    %v111 = vsub.s32 1, %v110
    %v112 = vrot.slane %v103, %v111
    %v131 = vunpack.c.l.b16 %v87
    %v132 = vunpack.c.h.b16 %v87
    %v133 = vunpack.c.l.b16 %v88
    %v134 = vunpack.c.h.b16 %v88
    %v135 = vunpack.c.l.b16 %v89
    %v136 = vunpack.c.h.b16 %v89
    %v137 = vunpack.c.l.b16 %v90
    %v138 = vunpack.c.h.b16 %v90
    %v139 = vunpack.c.l.b16 %v91
    %v140 = vunpack.c.h.b16 %v91
    %v141 = vunpack.c.l.b16 %v92
    %v142 = vunpack.c.h.b16 %v92
    %v143 = vunpack.c.l.b16 %v93
    %v144 = vunpack.c.h.b16 %v93
    %v145 = vunpack.c.l.b16 %v94
    %v146 = vunpack.c.h.b16 %v94
    %v147 = vunpack.c.l.b16 %v95
    %v148 = vunpack.c.h.b16 %v95
    %v149 = vunpack.c.l.b16 %v96
    %v150 = vunpack.c.h.b16 %v96
    %v151 = vunpack.c.l.b16 %v97
    %v152 = vunpack.c.h.b16 %v97
    %v153 = vunpack.c.l.b16 %v98
    %v154 = vunpack.c.h.b16 %v98
    %v155 = vunpack.c.l.b16 %v99
    %v156 = vunpack.c.h.b16 %v99
    %v157 = vunpack.c.l.b16 %v100
    %v158 = vunpack.c.h.b16 %v100
    %v159 = vunpack.c.l.b16 %v101
    %v160 = vunpack.c.h.b16 %v101
    %v161 = vunpack.c.l.b16 %v102
    %v162 = vunpack.c.h.b16 %v102
    %v163 = vpack.c.b16 %v133, %v131
    %v164 = vpack.c.b16 %v134, %v132
    %v165 = vpack.c.b16 %v137, %v135
    %v166 = vpack.c.b16 %v138, %v136
    %v167 = vpack.c.b16 %v141, %v139
    %v168 = vpack.c.b16 %v142, %v140
    %v169 = vpack.c.b16 %v145, %v143
    %v170 = vpack.c.b16 %v146, %v144
    %v171 = vpack.c.b16 %v149, %v147
    %v172 = vpack.c.b16 %v150, %v148
    %v173 = vpack.c.b16 %v153, %v151
    %v174 = vpack.c.b16 %v154, %v152
    %v175 = vpack.c.b16 %v157, %v155
    %v176 = vpack.c.b16 %v158, %v156
    %v177 = vpack.c.b16 %v161, %v159
    %v178 = vpack.c.b16 %v162, %v160
    %195 = vmatprep.subr.bf16.mxu0 %v164
    %196 = vmatpush1.bf16.msra.mxu0 %v163
    %197 = vmatprep.subr.bf16.mxu0 %v166
    %198 = vmatpush1.bf16.msra.mxu0 %v165
    %199 = vmatprep.subr.bf16.mxu0 %v168
    %200 = vmatpush1.bf16.msra.mxu0 %v167
    %201 = vmatprep.subr.bf16.mxu0 %v170
    %202 = vmatpush1.bf16.msra.mxu0 %v169
    %203 = vmatprep.subr.bf16.mxu0 %v172
    %204 = vmatpush1.bf16.msra.mxu0 %v171
    %205 = vmatprep.subr.bf16.mxu0 %v174
    %206 = vmatpush1.bf16.msra.mxu0 %v173
    %207 = vmatprep.subr.bf16.mxu0 %v176
    %208 = vmatpush1.bf16.msra.mxu0 %v175
    %209 = vmatprep.subr.bf16.mxu0 %v178
    %210 = vmatpush1.bf16.msra.mxu0 %v177
    %211 = vmatprep.subr.bf16.mxu0 0
    %212 = vmatpush1.bf16.msra.mxu0 0
    %213 = vmatprep.subr.bf16.mxu0 0
    %214 = vmatpush1.bf16.msra.mxu0 0
    %215 = vmatprep.subr.bf16.mxu0 0
    %216 = vmatpush1.bf16.msra.mxu0 0
    %217 = vmatprep.subr.bf16.mxu0 0
    %218 = vmatpush1.bf16.msra.mxu0 0
    %219 = vmatprep.subr.bf16.mxu0 0
    %220 = vmatpush1.bf16.msra.mxu0 0
    %221 = vmatprep.subr.bf16.mxu0 0
    %222 = vmatpush1.bf16.msra.mxu0 0
    %223 = vmatprep.subr.bf16.mxu0 0
    %224 = vmatpush1.bf16.msra.mxu0 0
    %225 = vmatprep.subr.bf16.mxu0 0
    %226 = vmatpush1.bf16.msra.mxu0 0
    %227 = vmatprep.mubr.bf16.mxu0 0
    %228 = vmatmul.mubr.bf16.gmra.mrb[0].mxu0 %v79
    %v229 = vpop.f32.mrb[0].mxu0
    %v230 = vadd.f32 %v108, %v229
    %v231 = vpop.f32.mrb[0].mxu0
    %v232 = vadd.f32 %v112, %v231
    %v233 = vpop.f32.mrb[0].mxu0
    %v234 = vadd.f32 %v108, %v233
    %v235 = vpop.f32.mrb[0].mxu0
    %v236 = vadd.f32 %v112, %v235
    %237 = vmatprep.mubr.bf16.mxu0 0
    %238 = vmatmul.mubr.bf16.gmra.mrb[0].mxu0 %v80
    %v239 = vpop.f32.mrb[0].mxu0
    %v240 = vadd.f32 %v108, %v239
    %v241 = vpop.f32.mrb[0].mxu0
    %v242 = vadd.f32 %v112, %v241
    %v243 = vpop.f32.mrb[0].mxu0
    %v244 = vadd.f32 %v108, %v243
    %v245 = vpop.f32.mrb[0].mxu0
    %v246 = vadd.f32 %v112, %v245
    %247 = vmatprep.mubr.bf16.mxu0 0
    %248 = vmatmul.mubr.bf16.gmra.mrb[0].mxu0 %v81
    %v249 = vpop.f32.mrb[0].mxu0
    %v250 = vadd.f32 %v108, %v249
    %v251 = vpop.f32.mrb[0].mxu0
    %v252 = vadd.f32 %v112, %v251
    %v253 = vpop.f32.mrb[0].mxu0
    %v254 = vadd.f32 %v108, %v253
    %v255 = vpop.f32.mrb[0].mxu0
    %v256 = vadd.f32 %v112, %v255
    %257 = vmatprep.mubr.bf16.mxu0 0
    %258 = vmatmul.mubr.bf16.gmra.mrb[0].mxu0 %v82
    %v259 = vpop.f32.mrb[0].mxu0
    %v260 = vadd.f32 %v108, %v259
    %v261 = vpop.f32.mrb[0].mxu0
    %v262 = vadd.f32 %v112, %v261
    %v263 = vpop.f32.mrb[0].mxu0
    %v264 = vadd.f32 %v108, %v263
    %v265 = vpop.f32.mrb[0].mxu0
    %v266 = vadd.f32 %v112, %v265
    %267 = vmatprep.mubr.bf16.mxu0 0
    %268 = vmatmul.mubr.bf16.gmra.mrb[0].mxu0 %v83
    %v269 = vpop.f32.mrb[0].mxu0
    %v270 = vadd.f32 %v108, %v269
    %v271 = vpop.f32.mrb[0].mxu0
    %v272 = vadd.f32 %v112, %v271
    %v273 = vpop.f32.mrb[0].mxu0
    %v274 = vadd.f32 %v108, %v273
    %v275 = vpop.f32.mrb[0].mxu0
    %v276 = vadd.f32 %v112, %v275
    %277 = vmatprep.mubr.bf16.mxu0 0
    %278 = vmatmul.mubr.bf16.gmra.mrb[0].mxu0 %v84
    %v279 = vpop.f32.mrb[0].mxu0
    %v280 = vadd.f32 %v108, %v279
    %v281 = vpop.f32.mrb[0].mxu0
    %v282 = vadd.f32 %v112, %v281
    %v283 = vpop.f32.mrb[0].mxu0
    %v284 = vadd.f32 %v108, %v283
    %v285 = vpop.f32.mrb[0].mxu0
    %v286 = vadd.f32 %v112, %v285
    %287 = vmatprep.mubr.bf16.mxu0 0
    %288 = vmatmul.mubr.bf16.gmra.mrb[0].mxu0 %v85
    %v289 = vpop.f32.mrb[0].mxu0
    %v290 = vadd.f32 %v108, %v289
    %v291 = vpop.f32.mrb[0].mxu0
    %v292 = vadd.f32 %v112, %v291
    %v293 = vpop.f32.mrb[0].mxu0
    %v294 = vadd.f32 %v108, %v293
    %v295 = vpop.f32.mrb[0].mxu0
    %v296 = vadd.f32 %v112, %v295
    %297 = vmatprep.mubr.bf16.mxu0 0
    %298 = vmatmul.mubr.bf16.gmra.mrb[0].mxu0 %v86
    %v299 = vpop.f32.mrb[0].mxu0
    %v300 = vadd.f32 %v108, %v299
    %v301 = vpop.f32.mrb[0].mxu0
    %v302 = vadd.f32 %v112, %v301
    %v303 = vpop.f32.mrb[0].mxu0
    %v304 = vadd.f32 %v108, %v303
    %v305 = vpop.f32.mrb[0].mxu0
    %v306 = vadd.f32 %v112, %v305
    %307 = vdwg.mxu0
    %v308 = vmul.f32 %v230, 0.5
    %v309 = vmul.f32 %v232, 0.5
    %v310 = vmul.f32 %v234, 0.5
    %v311 = vmul.f32 %v236, 0.5
    %v312 = vmul.f32 %v240, 0.5
    %v313 = vmul.f32 %v242, 0.5
    %v314 = vmul.f32 %v244, 0.5
    %v315 = vmul.f32 %v246, 0.5
    %v316 = vmul.f32 %v250, 0.5
    %v317 = vmul.f32 %v252, 0.5
    %v318 = vmul.f32 %v254, 0.5
    %v319 = vmul.f32 %v256, 0.5
    %v320 = vmul.f32 %v260, 0.5
    %v321 = vmul.f32 %v262, 0.5
    %v322 = vmul.f32 %v264, 0.5
    %v323 = vmul.f32 %v266, 0.5
    %v324 = vmul.f32 %v270, 0.5
    %v325 = vmul.f32 %v272, 0.5
    %v326 = vmul.f32 %v274, 0.5
    %v327 = vmul.f32 %v276, 0.5
    %v328 = vmul.f32 %v280, 0.5
    %v329 = vmul.f32 %v282, 0.5
    %v330 = vmul.f32 %v284, 0.5
    %v331 = vmul.f32 %v286, 0.5
    %v332 = vmul.f32 %v290, 0.5
    %v333 = vmul.f32 %v292, 0.5
    %v334 = vmul.f32 %v294, 0.5
    %v335 = vmul.f32 %v296, 0.5
    %v336 = vmul.f32 %v300, 0.5
    %v337 = vmul.f32 %v302, 0.5
    %v338 = vmul.f32 %v304, 0.5
    %v339 = vmul.f32 %v306, 0.5
    %v340 = vmul.f32 %v230, 0.70710677
    %v341 = vmul.f32 %v232, 0.70710677
    %v342 = vmul.f32 %v234, 0.70710677
    %v343 = vmul.f32 %v236, 0.70710677
    %v344 = vmul.f32 %v240, 0.70710677
    %v345 = vmul.f32 %v242, 0.70710677
    %v346 = vmul.f32 %v244, 0.70710677
    %v347 = vmul.f32 %v246, 0.70710677
    %v348 = vmul.f32 %v250, 0.70710677
    %v349 = vmul.f32 %v252, 0.70710677
    %v350 = vmul.f32 %v254, 0.70710677
    %v351 = vmul.f32 %v256, 0.70710677
    %v352 = vmul.f32 %v260, 0.70710677
    %v353 = vmul.f32 %v262, 0.70710677
    %v354 = vmul.f32 %v264, 0.70710677
    %v355 = vmul.f32 %v266, 0.70710677
    %v356 = vmul.f32 %v270, 0.70710677
    %v357 = vmul.f32 %v272, 0.70710677
    %v358 = vmul.f32 %v274, 0.70710677
    %v359 = vmul.f32 %v276, 0.70710677
    %v360 = vmul.f32 %v280, 0.70710677
    %v361 = vmul.f32 %v282, 0.70710677
    %v362 = vmul.f32 %v284, 0.70710677
    %v363 = vmul.f32 %v286, 0.70710677
    %v364 = vmul.f32 %v290, 0.70710677
    %v365 = vmul.f32 %v292, 0.70710677
    %v366 = vmul.f32 %v294, 0.70710677
    %v367 = vmul.f32 %v296, 0.70710677
    %v368 = vmul.f32 %v300, 0.70710677
    %v369 = vmul.f32 %v302, 0.70710677
    %v370 = vmul.f32 %v304, 0.70710677
    %v371 = vmul.f32 %v306, 0.70710677
    %v372 = verf.f32.pop %v340
    %v373 = verf.f32.pop %v341
    %v374 = verf.f32.pop %v342
    %v375 = verf.f32.pop %v343
    %v376 = verf.f32.pop %v344
    %v377 = verf.f32.pop %v345
    %v378 = verf.f32.pop %v346
    %v379 = verf.f32.pop %v347
    %v380 = verf.f32.pop %v348
    %v381 = verf.f32.pop %v349
    %v382 = verf.f32.pop %v350
    %v383 = verf.f32.pop %v351
    %v384 = verf.f32.pop %v352
    %v385 = verf.f32.pop %v353
    %v386 = verf.f32.pop %v354
    %v387 = verf.f32.pop %v355
    %v388 = verf.f32.pop %v356
    %v389 = verf.f32.pop %v357
    %v390 = verf.f32.pop %v358
    %v391 = verf.f32.pop %v359
    %v392 = verf.f32.pop %v360
    %v393 = verf.f32.pop %v361
    %v394 = verf.f32.pop %v362
    %v395 = verf.f32.pop %v363
    %v396 = verf.f32.pop %v364
    %v397 = verf.f32.pop %v365
    %v398 = verf.f32.pop %v366
    %v399 = verf.f32.pop %v367
    %v400 = verf.f32.pop %v368
    %v401 = verf.f32.pop %v369
    %v402 = verf.f32.pop %v370
    %v403 = verf.f32.pop %v371
    %v404 = vadd.f32 %v372, 1.0
    %v405 = vadd.f32 %v373, 1.0
    %v406 = vadd.f32 %v374, 1.0
    %v407 = vadd.f32 %v375, 1.0
    %v408 = vadd.f32 %v376, 1.0
    %v409 = vadd.f32 %v377, 1.0
    %v410 = vadd.f32 %v378, 1.0
    %v411 = vadd.f32 %v379, 1.0
    %v412 = vadd.f32 %v380, 1.0
    %v413 = vadd.f32 %v381, 1.0
    %v414 = vadd.f32 %v382, 1.0
    %v415 = vadd.f32 %v383, 1.0
    %v416 = vadd.f32 %v384, 1.0
    %v417 = vadd.f32 %v385, 1.0
    %v418 = vadd.f32 %v386, 1.0
    %v419 = vadd.f32 %v387, 1.0
    %v420 = vadd.f32 %v388, 1.0
    %v421 = vadd.f32 %v389, 1.0
    %v422 = vadd.f32 %v390, 1.0
    %v423 = vadd.f32 %v391, 1.0
    %v424 = vadd.f32 %v392, 1.0
    %v425 = vadd.f32 %v393, 1.0
    %v426 = vadd.f32 %v394, 1.0
    %v427 = vadd.f32 %v395, 1.0
    %v428 = vadd.f32 %v396, 1.0
    %v429 = vadd.f32 %v397, 1.0
    %v430 = vadd.f32 %v398, 1.0
    %v431 = vadd.f32 %v399, 1.0
    %v432 = vadd.f32 %v400, 1.0
    %v433 = vadd.f32 %v401, 1.0
    %v434 = vadd.f32 %v402, 1.0
    %v435 = vadd.f32 %v403, 1.0
    %v436 = vmul.f32 %v308, %v404
    %v437 = vmul.f32 %v309, %v405
    %v438 = vmul.f32 %v310, %v406
    %v439 = vmul.f32 %v311, %v407
    %v440 = vmul.f32 %v312, %v408
    %v441 = vmul.f32 %v313, %v409
    %v442 = vmul.f32 %v314, %v410
    %v443 = vmul.f32 %v315, %v411
    %v444 = vmul.f32 %v316, %v412
    %v445 = vmul.f32 %v317, %v413
    %v446 = vmul.f32 %v318, %v414
    %v447 = vmul.f32 %v319, %v415
    %v448 = vmul.f32 %v320, %v416
    %v449 = vmul.f32 %v321, %v417
    %v450 = vmul.f32 %v322, %v418
    %v451 = vmul.f32 %v323, %v419
    %v452 = vmul.f32 %v324, %v420
    %v453 = vmul.f32 %v325, %v421
    %v454 = vmul.f32 %v326, %v422
    %v455 = vmul.f32 %v327, %v423
    %v456 = vmul.f32 %v328, %v424
    %v457 = vmul.f32 %v329, %v425
    %v458 = vmul.f32 %v330, %v426
    %v459 = vmul.f32 %v331, %v427
    %v460 = vmul.f32 %v332, %v428
    %v461 = vmul.f32 %v333, %v429
    %v462 = vmul.f32 %v334, %v430
    %v463 = vmul.f32 %v335, %v431
    %v464 = vmul.f32 %v336, %v432
    %v465 = vmul.f32 %v337, %v433
    %v466 = vmul.f32 %v338, %v434
    %v467 = vmul.f32 %v339, %v435
    %v468 = vpack.c.bf16 %v438, %v436
    %v469 = vpack.c.bf16 %v439, %v437
    %v470 = vpack.c.bf16 %v442, %v440
    %v471 = vpack.c.bf16 %v443, %v441
    %v472 = vpack.c.bf16 %v446, %v444
    %v473 = vpack.c.bf16 %v447, %v445
    %v474 = vpack.c.bf16 %v450, %v448
    %v475 = vpack.c.bf16 %v451, %v449
    %v476 = vpack.c.bf16 %v454, %v452
    %v477 = vpack.c.bf16 %v455, %v453
    %v478 = vpack.c.bf16 %v458, %v456
    %v479 = vpack.c.bf16 %v459, %v457
    %v480 = vpack.c.bf16 %v462, %v460
    %v481 = vpack.c.bf16 %v463, %v461
    %v482 = vpack.c.bf16 %v466, %v464
    %v483 = vpack.c.bf16 %v467, %v465
    %v484 = vld [vmem:[#allocation7] sm:$0xf]
    %v485 = vld [vmem:[#allocation7 + $0x4] sm:$0xf]
    %v486 = vld [vmem:[#allocation7 + $0x8] sm:$0xf]
    %v487 = vld [vmem:[#allocation7 + $0xc] sm:$0xf]
    %v488 = vld [vmem:[#allocation7 + $0x10] sm:$0xf]
    %v489 = vld [vmem:[#allocation7 + $0x14] sm:$0xf]
    %v490 = vld [vmem:[#allocation7 + $0x18] sm:$0xf]
    %v491 = vld [vmem:[#allocation7 + $0x1c] sm:$0xf]
    %v492 = vld [vmem:[#allocation7 + $0x20] sm:$0xf]
    %v493 = vld [vmem:[#allocation7 + $0x24] sm:$0xf]
    %v494 = vld [vmem:[#allocation7 + $0x28] sm:$0xf]
    %v495 = vld [vmem:[#allocation7 + $0x2c] sm:$0xf]
    %v496 = vld [vmem:[#allocation7 + $0x30] sm:$0xf]
    %v497 = vld [vmem:[#allocation7 + $0x34] sm:$0xf]
    %v498 = vld [vmem:[#allocation7 + $0x38] sm:$0xf]
    %v499 = vld [vmem:[#allocation7 + $0x3c] sm:$0xf]
    %v500 = vld [vmem:[#allocation7 + $0x40] sm:$0xf]
    %v501 = vld [vmem:[#allocation7 + $0x44] sm:$0xf]
    %v502 = vld [vmem:[#allocation7 + $0x48] sm:$0xf]
    %v503 = vld [vmem:[#allocation7 + $0x4c] sm:$0xf]
    %v504 = vld [vmem:[#allocation7 + $0x50] sm:$0xf]
    %v505 = vld [vmem:[#allocation7 + $0x54] sm:$0xf]
    %v506 = vld [vmem:[#allocation7 + $0x58] sm:$0xf]
    %v507 = vld [vmem:[#allocation7 + $0x5c] sm:$0xf]
    %v508 = vld [vmem:[#allocation7 + $0x60] sm:$0xf]
    %v509 = vld [vmem:[#allocation7 + $0x64] sm:$0xf]
    %v510 = vld [vmem:[#allocation7 + $0x68] sm:$0xf]
    %v511 = vld [vmem:[#allocation7 + $0x6c] sm:$0xf]
    %v512 = vld [vmem:[#allocation7 + $0x70] sm:$0xf]
    %v513 = vld [vmem:[#allocation7 + $0x74] sm:$0xf]
    %v514 = vld [vmem:[#allocation7 + $0x78] sm:$0xf]
    %v515 = vld [vmem:[#allocation7 + $0x7c] sm:$0xf]
    %v516 = vld [vmem:[%s4] sm:$0x1]
    %v518 = vlaneseq
    %v519 = vshrl.u32 %v518, 7
    %v520 = vsub.s32 0, %v519
    %v521 = vrot.slane %v516, %v520
    %v555 = vunpack.c.l.b16 %v484
    %v556 = vunpack.c.l.b16 %v485
    %v557 = vunpack.c.l.b16 %v486
    %v558 = vunpack.c.l.b16 %v487
    %v559 = vunpack.c.l.b16 %v488
    %v560 = vunpack.c.l.b16 %v489
    %v561 = vunpack.c.l.b16 %v490
    %v562 = vunpack.c.l.b16 %v491
    %v563 = vunpack.c.l.b16 %v492
    %v564 = vunpack.c.l.b16 %v493
    %v565 = vunpack.c.l.b16 %v494
    %v566 = vunpack.c.l.b16 %v495
    %v567 = vunpack.c.l.b16 %v496
    %v568 = vunpack.c.l.b16 %v497
    %v569 = vunpack.c.l.b16 %v498
    %v570 = vunpack.c.l.b16 %v499
    %v571 = vunpack.c.l.b16 %v500
    %v572 = vunpack.c.l.b16 %v501
    %v573 = vunpack.c.l.b16 %v502
    %v574 = vunpack.c.l.b16 %v503
    %v575 = vunpack.c.l.b16 %v504
    %v576 = vunpack.c.l.b16 %v505
    %v577 = vunpack.c.l.b16 %v506
    %v578 = vunpack.c.l.b16 %v507
    %v579 = vunpack.c.l.b16 %v508
    %v580 = vunpack.c.l.b16 %v509
    %v581 = vunpack.c.l.b16 %v510
    %v582 = vunpack.c.l.b16 %v511
    %v583 = vunpack.c.l.b16 %v512
    %v584 = vunpack.c.l.b16 %v513
    %v585 = vunpack.c.l.b16 %v514
    %v586 = vunpack.c.l.b16 %v515
    %v587 = vpack.c.b16 %v556, %v555
    %v588 = vpack.c.b16 %v558, %v557
    %v589 = vpack.c.b16 %v560, %v559
    %v590 = vpack.c.b16 %v562, %v561
    %v591 = vpack.c.b16 %v564, %v563
    %v592 = vpack.c.b16 %v566, %v565
    %v593 = vpack.c.b16 %v568, %v567
    %v594 = vpack.c.b16 %v570, %v569
    %v595 = vpack.c.b16 %v572, %v571
    %v596 = vpack.c.b16 %v574, %v573
    %v597 = vpack.c.b16 %v576, %v575
    %v598 = vpack.c.b16 %v578, %v577
    %v599 = vpack.c.b16 %v580, %v579
    %v600 = vpack.c.b16 %v582, %v581
    %v601 = vpack.c.b16 %v584, %v583
    %v602 = vpack.c.b16 %v586, %v585
    %619 = vmatprep.subr.bf16.mxu0 0
    %620 = vmatpush1.bf16.msra.mxu0 %v587
    %621 = vmatprep.subr.bf16.mxu0 0
    %622 = vmatpush1.bf16.msra.mxu0 %v588
    %623 = vmatprep.subr.bf16.mxu0 0
    %624 = vmatpush1.bf16.msra.mxu0 %v589
    %625 = vmatprep.subr.bf16.mxu0 0
    %626 = vmatpush1.bf16.msra.mxu0 %v590
    %627 = vmatprep.subr.bf16.mxu0 0
    %628 = vmatpush1.bf16.msra.mxu0 %v591
    %629 = vmatprep.subr.bf16.mxu0 0
    %630 = vmatpush1.bf16.msra.mxu0 %v592
    %631 = vmatprep.subr.bf16.mxu0 0
    %632 = vmatpush1.bf16.msra.mxu0 %v593
    %633 = vmatprep.subr.bf16.mxu0 0
    %634 = vmatpush1.bf16.msra.mxu0 %v594
    %635 = vmatprep.subr.bf16.mxu0 0
    %636 = vmatpush1.bf16.msra.mxu0 %v595
    %637 = vmatprep.subr.bf16.mxu0 0
    %638 = vmatpush1.bf16.msra.mxu0 %v596
    %639 = vmatprep.subr.bf16.mxu0 0
    %640 = vmatpush1.bf16.msra.mxu0 %v597
    %641 = vmatprep.subr.bf16.mxu0 0
    %642 = vmatpush1.bf16.msra.mxu0 %v598
    %643 = vmatprep.subr.bf16.mxu0 0
    %644 = vmatpush1.bf16.msra.mxu0 %v599
    %645 = vmatprep.subr.bf16.mxu0 0
    %646 = vmatpush1.bf16.msra.mxu0 %v600
    %647 = vmatprep.subr.bf16.mxu0 0
    %648 = vmatpush1.bf16.msra.mxu0 %v601
    %649 = vmatprep.subr.bf16.mxu0 0
    %650 = vmatpush1.bf16.msra.mxu0 %v602
    %651 = vmatprep.mubr.bf16.mxu0 %v469
    %652 = vmatmul.mubr.bf16.gmra.mrb[0].mxu0 %v468
    %v653 = vpop.f32.mrb[0].mxu0
    %v654 = vadd.f32 %v521, %v653
    %v655 = vpop.f32.mrb[0].mxu0
    %v656 = vpop.f32.mrb[0].mxu0
    %v657 = vadd.f32 %v521, %v656
    %v658 = vpop.f32.mrb[0].mxu0
    %659 = vmatprep.mubr.bf16.mxu0 %v471
    %660 = vmatmul.mubr.bf16.gmra.mrb[0].mxu0 %v470
    %v661 = vpop.f32.mrb[0].mxu0
    %v662 = vadd.f32 %v521, %v661
    %v663 = vpop.f32.mrb[0].mxu0
    %v664 = vpop.f32.mrb[0].mxu0
    %v665 = vadd.f32 %v521, %v664
    %v666 = vpop.f32.mrb[0].mxu0
    %667 = vmatprep.mubr.bf16.mxu0 %v473
    %668 = vmatmul.mubr.bf16.gmra.mrb[0].mxu0 %v472
    %v669 = vpop.f32.mrb[0].mxu0
    %v670 = vadd.f32 %v521, %v669
    %v671 = vpop.f32.mrb[0].mxu0
    %v672 = vpop.f32.mrb[0].mxu0
    %v673 = vadd.f32 %v521, %v672
    %v674 = vpop.f32.mrb[0].mxu0
    %675 = vmatprep.mubr.bf16.mxu0 %v475
    %676 = vmatmul.mubr.bf16.gmra.mrb[0].mxu0 %v474
    %v677 = vpop.f32.mrb[0].mxu0
    %v678 = vadd.f32 %v521, %v677
    %v679 = vpop.f32.mrb[0].mxu0
    %v680 = vpop.f32.mrb[0].mxu0
    %v681 = vadd.f32 %v521, %v680
    %v682 = vpop.f32.mrb[0].mxu0
    %683 = vmatprep.mubr.bf16.mxu0 %v477
    %684 = vmatmul.mubr.bf16.gmra.mrb[0].mxu0 %v476
    %v685 = vpop.f32.mrb[0].mxu0
    %v686 = vadd.f32 %v521, %v685
    %v687 = vpop.f32.mrb[0].mxu0
    %v688 = vpop.f32.mrb[0].mxu0
    %v689 = vadd.f32 %v521, %v688
    %v690 = vpop.f32.mrb[0].mxu0
    %691 = vmatprep.mubr.bf16.mxu0 %v479
    %692 = vmatmul.mubr.bf16.gmra.mrb[0].mxu0 %v478
    %v693 = vpop.f32.mrb[0].mxu0
    %v694 = vadd.f32 %v521, %v693
    %v695 = vpop.f32.mrb[0].mxu0
    %v696 = vpop.f32.mrb[0].mxu0
    %v697 = vadd.f32 %v521, %v696
    %v698 = vpop.f32.mrb[0].mxu0
    %699 = vmatprep.mubr.bf16.mxu0 %v481
    %700 = vmatmul.mubr.bf16.gmra.mrb[0].mxu0 %v480
    %v701 = vpop.f32.mrb[0].mxu0
    %v702 = vadd.f32 %v521, %v701
    %v703 = vpop.f32.mrb[0].mxu0
    %v704 = vpop.f32.mrb[0].mxu0
    %v705 = vadd.f32 %v521, %v704
    %v706 = vpop.f32.mrb[0].mxu0
    %707 = vmatprep.mubr.bf16.mxu0 %v483
    %708 = vmatmul.mubr.bf16.gmra.mrb[0].mxu0 %v482
    %v709 = vpop.f32.mrb[0].mxu0
    %v710 = vadd.f32 %v521, %v709
    %v711 = vpop.f32.mrb[0].mxu0
    %v712 = vpop.f32.mrb[0].mxu0
    %v713 = vadd.f32 %v521, %v712
    %v714 = vpop.f32.mrb[0].mxu0
    %715 = vdwg.mxu0
    %716 = vst [vmem:[#allocation8] sm:$0xff] %v654
    %717 = vst [vmem:[#allocation8 + $0x8] sm:$0xff] %v657
    %718 = vst [vmem:[#allocation8 + $0x10] sm:$0xff] %v662
    %719 = vst [vmem:[#allocation8 + $0x18] sm:$0xff] %v665
    %720 = vst [vmem:[#allocation8 + $0x20] sm:$0xff] %v670
    %721 = vst [vmem:[#allocation8 + $0x28] sm:$0xff] %v673
    %722 = vst [vmem:[#allocation8 + $0x30] sm:$0xff] %v678
    %723 = vst [vmem:[#allocation8 + $0x38] sm:$0xff] %v681
    %724 = vst [vmem:[#allocation8 + $0x40] sm:$0xff] %v686
    %725 = vst [vmem:[#allocation8 + $0x48] sm:$0xff] %v689
    %726 = vst [vmem:[#allocation8 + $0x50] sm:$0xff] %v694
    %727 = vst [vmem:[#allocation8 + $0x58] sm:$0xff] %v697
    %728 = vst [vmem:[#allocation8 + $0x60] sm:$0xff] %v702
    %729 = vst [vmem:[#allocation8 + $0x68] sm:$0xff] %v705
    %730 = vst [vmem:[#allocation8 + $0x70] sm:$0xff] %v710
    %731 = vst [vmem:[#allocation8 + $0x78] sm:$0xff] %v713
    // Predicated region
    $region34: #{tpu_custom_call.1} parent=1 // pred_check
      _
    $region35: #{tpu_custom_call.1} parent=1 // pred_check_branch
      %733 = sbr.rel (0) target = $region37
    $region36: #{tpu_custom_call.1} parent=1 // pred_region
      %s735 = ssub.s32 2048, 2048
      %736 = vsyncadd [#allocation4], %s735
      %s737 = sshll.u32 [#allocation8], 4
      %s738 = int_to_ptr.vmem [resolvable:$true] %s737
      %743 = dma.vmem_to_hbm [thread:$0]  %s738, 2048, %s5, [#allocation4], 128, 128, 8
    $region37: #{tpu_custom_call.1} parent=1 // pred_fallthru
      _
    // Predicated region
    $region38: #{tpu_custom_call.1} parent=1 // pred_check
      _
    $region39: #{tpu_custom_call.1} parent=1 // pred_check_branch
      %745 = sbr.rel (0) target = $region41
    $region40: #{tpu_custom_call.1} parent=1 // pred_region
      %746 = dma.done [#allocation4], 2048
    $region41: #{tpu_custom_call.1} parent=1 // pred_fallthru
      _
    %747 = vsyncpa [#allocation3], 1
    %748 = vsyncpa [#allocation6], 1
    %749 = vsyncpa [#allocation4], 1

</llo_original>
